<compile_context>
chip_gen: v7x
topology: tpu7x:2x2x1
jax: 0.10.0
libtpu: 0.0.40
codegen_flags: <defaults>
</compile_context>

<pallas_src>
import functools

import jax
import jax.numpy as jnp
from jax.experimental import pallas as pl
from jax.experimental.pallas import tpu as pltpu


def _round_up(a: int, b: int) -> int:
    return (a + b - 1) // b * b


def _make_lrn_kernel(local_size: int, alpha: float, beta: float, c_real: int):
    assert local_size % 2 == 1, "local_size must be odd (so output C matches input C)"
    pad = (local_size - 1) // 2
    inv_n = float(alpha) / float(local_size)
    # Neighbors further than C-1 channels away are always zero-padding -> skip.
    d_max = min(pad, max(c_real - 1, 0))
    beta = float(beta)

    def lrn_kernel(x_ref, o_ref):
        # x_ref: (NB, Cp, T) block; Cp is the channel axis padded to a multiple of 8.
        x = x_ref[...]
        xf = x.astype(jnp.float32)
        x2 = xf * xf

        # Windowed sum across the channel (sublane) axis with zero padding,
        # via XLU rotations + iota masks (keeps only x2/acc live).
        acc = x2
        if d_max > 0:
            cp = x2.shape[1]
            row = jax.lax.broadcasted_iota(jnp.int32, x2.shape, dimension=1)
            for d in range(1, d_max + 1):
                # x2[c+d] -> row c  (rotate by cp-d == rotate by -d on length cp)
                plus = pltpu.roll(x2, shift=cp - d, axis=1)
                # x2[c-d] -> row c
                minus = pltpu.roll(x2, shift=d, axis=1)
                acc = acc + jnp.where(row < (c_real - d), plus, 0.0)
                acc = acc + jnp.where(row >= d, minus, 0.0)

        t = acc * inv_n + 1.0  # always >= 1, so the inverse power is well defined
        if beta == 0.75:
            r = jax.lax.rsqrt(t)           # t^(-1/2)
            inv = r * jnp.sqrt(r)          # t^(-3/4)
        elif beta == 0.5:
            inv = jax.lax.rsqrt(t)
        else:
            inv = jnp.exp(-beta * jnp.log(t))   # general t^(-beta)
        o_ref[...] = (xf * inv).astype(o_ref.dtype)

    return lrn_kernel


@functools.partial(jax.jit, static_argnames=("local_size", "alpha", "beta"))
def lrn_forward(x, *, local_size: int = 1, alpha: float = 1.0, beta: float = 0.75):
    """LRN across channels. x: (N, C, H, W)."""
    N, C, H, W = x.shape
    HW = H * W
    itemsize = jnp.dtype(x.dtype).itemsize

    # Pad channels to a multiple of 8 (sublane alignment for the roll) and
    # the spatial axis to a lane-dense multiple of the chosen tile.
    Cp = _round_up(C, 8)

    target_bytes = 1 << 20  # ~1 MiB of input payload per grid step
    hw_min = _round_up(HW, 128)
    hw_cap = max(128, (target_bytes // (Cp * itemsize)) // 128 * 128)
    hw_tile = min(hw_min, hw_cap)
    HWp = _round_up(HW, hw_tile)
    num_hw_tiles = HWp // hw_tile

    # If there is only one spatial tile and it is small, block several batch
    # elements per grid step so the per-step overhead is amortized.
    nb = 1
    if num_hw_tiles == 1:
        per_step = Cp * hw_tile * itemsize
        max_nb = max(1, target_bytes // per_step)
        for cand in range(min(N, max_nb), 0, -1):
            if N % cand == 0:
                nb = cand
                break

    x2d = x.reshape(N, C, HW)
    xp = jnp.pad(x2d, ((0, 0), (0, Cp - C), (0, HWp - HW)))

    kernel = _make_lrn_kernel(local_size, alpha, beta, C)

    outp = pl.pallas_call(
        kernel,
        out_shape=jax.ShapeDtypeStruct((N, Cp, HWp), x.dtype),
        grid_spec=pltpu.PrefetchScalarGridSpec(
            num_scalar_prefetch=0,
            grid=(N // nb, num_hw_tiles),
            in_specs=[pl.BlockSpec((nb, Cp, hw_tile), lambda n, t: (n, 0, t))],
            out_specs=pl.BlockSpec((nb, Cp, hw_tile), lambda n, t: (n, 0, t)),
        ),
        compiler_params=pltpu.CompilerParams(
            dimension_semantics=("parallel", "parallel"),
            vmem_limit_bytes=48 * 1024 * 1024,
        ),
    )(xp)

    return outp[:, :C, :HW].reshape(N, C, H, W)


def lrn_reference(x, *, local_size=1, alpha=1.0, beta=0.75):
    """Pure-JAX reference matching the PyTorch module."""
    pad = (local_size - 1) // 2
    xf = x.astype(jnp.float32)
    x2 = xf * xf
    # zero-pad channel axis, sliding-window sum, divide by local_size
    x2p = jnp.pad(x2, ((0, 0), (pad, pad), (0, 0), (0, 0)))
    C = x.shape[1]
    acc = sum(x2p[:, d : d + C] for d in range(local_size))
    div = (acc / local_size * alpha + 1.0) ** beta
    return (xf / div).astype(x.dtype)


if __name__ == "__main__":
    key = jax.random.PRNGKey(0)
    N, C, H, W = 2, 4, 16, 16
    x = jax.random.normal(key, (N, C, H, W), dtype=jnp.float32)

    # Default module config: local_size=1, alpha=1.0, beta=0.75
    out = lrn_forward(x, local_size=1, alpha=1.0, beta=0.75)
    jax.block_until_ready(out)
    ref = lrn_reference(x, local_size=1, alpha=1.0, beta=0.75)
    assert jnp.allclose(out, ref, atol=1e-5, rtol=1e-5), "mismatch (local_size=1)"

    # Non-trivial channel window (common AlexNet-style config) -> exercises roll+mask.
    out3 = lrn_forward(x, local_size=3, alpha=1e-4, beta=0.75)
    jax.block_until_ready(out3)
    ref3 = lrn_reference(x, local_size=3, alpha=1e-4, beta=0.75)
    assert jnp.allclose(out3, ref3, atol=1e-5, rtol=1e-5), "mismatch (local_size=3)"

    # Non-multiple-of-8 channels + wider window -> exercises channel padding masks.
    key2 = jax.random.PRNGKey(1)
    x5 = jax.random.normal(key2, (2, 5, 8, 8), dtype=jnp.float32)
    out5 = lrn_forward(x5, local_size=5, alpha=2e-4, beta=0.75)
    jax.block_until_ready(out5)
    ref5 = lrn_reference(x5, local_size=5, alpha=2e-4, beta=0.75)
    assert jnp.allclose(out5, ref5, atol=1e-5, rtol=1e-5), "mismatch (local_size=5, C=5)"

    print("KERNEL_OK")
</pallas_src>

<mosaic_0001>
module attributes {stable_mosaic.version = 11 : i64} {
  func.func @lrn_kernel(%arg0: i32, %arg1: i32, %arg2: memref<2x8x256xf32, #tpu.memory_space<vmem>>, %arg3: memref<2x8x256xf32, #tpu.memory_space<vmem>>) attributes {dimension_semantics = [#tpu.dimension_semantics<parallel>, #tpu.dimension_semantics<parallel>], iteration_bounds = array<i64: 1, 1>, scalar_prefetch = 0 : i64, scratch_operands = 0 : i64, tpu.core_type = #tpu.core_type<tc>, window_params = [{transform_indices = @transform_0, window_bounds = array<i64: 2, 8, 256>}, {transform_indices = @transform_1, window_bounds = array<i64: 2, 8, 256>}]} {
    %c0 = arith.constant 0 : index
    %c0_0 = arith.constant 0 : index
    %c0_1 = arith.constant 0 : index
    %0 = vector.load %arg2[%c0, %c0_0, %c0_1] : memref<2x8x256xf32, #tpu.memory_space<vmem>>, vector<2x8x256xf32>
    %1 = arith.mulf %0, %0 : vector<2x8x256xf32>
    %cst = arith.constant 1.000000e+00 : f32
    %2 = vector.broadcast %cst : f32 to vector<2x8x256xf32>
    %3 = arith.mulf %1, %2 : vector<2x8x256xf32>
    %cst_2 = arith.constant 1.000000e+00 : f32
    %4 = vector.broadcast %cst_2 : f32 to vector<2x8x256xf32>
    %5 = arith.addf %3, %4 : vector<2x8x256xf32>
    %6 = math.rsqrt %5 : vector<2x8x256xf32>
    %7 = math.sqrt %6 : vector<2x8x256xf32>
    %8 = arith.mulf %6, %7 : vector<2x8x256xf32>
    %9 = arith.mulf %0, %8 : vector<2x8x256xf32>
    %c0_3 = arith.constant 0 : index
    %c0_4 = arith.constant 0 : index
    %c0_5 = arith.constant 0 : index
    %10 = vector.load %arg3[%c0_3, %c0_4, %c0_5] : memref<2x8x256xf32, #tpu.memory_space<vmem>>, vector<2x8x256xf32>
    tpu.vector_store %arg3[%c0_3, %c0_4, %c0_5], %9 {strides = array<i32>} : memref<2x8x256xf32, #tpu.memory_space<vmem>>, vector<2x8x256xf32>,
    return
  }
  func.func @transform_0(%arg0: i32, %arg1: i32) -> (i32, i32, i32) {
    %c0_i32 = arith.constant 0 : i32
    %c0_i32_0 = arith.constant 0 : i32
    return %arg0, %c0_i32, %arg1 : i32, i32, i32
  }
  func.func @transform_1(%arg0: i32, %arg1: i32) -> (i32, i32, i32) {
    %c0_i32 = arith.constant 0 : i32
    %c0_i32_0 = arith.constant 0 : i32
    return %arg0, %c0_i32, %arg1 : i32, i32, i32
  }
}

</mosaic_0001>

<llo_original>
// kernel: lrn_forward.1
$region0: #{lrn_forward.1}
  #allocation0 [shape = 'u32[]', space=smem, size = 0x4, offset = 0x4, fixed_abs, tag = 'smem constant byte address 0x4 - core index']
  #allocation1 [shape = 'u32[144,128]{1,0:T(1,128)}', space=vmem, size = 0x12000, scoped, tag = 'internal scratch']
  %s0 = inlined_call_operand.vmem [shape: f32[2,8,256], index: 0, kind: input, shape index: {}]
  %s1 = inlined_call_operand.vmem [shape: f32[2,8,256], index: 1, kind: output, shape index: {}]
  %s2 = sld [smem:[#allocation0]]
  $region14: #{lrn_forward.1} parent=0
    _
  %s4 = ssub.s32 1, %s2
  %s5 = scalar_select 0, %s4, %s2
  // Predicated region
  $region2: #{lrn_forward.1} parent=0 // pred_check
    _
  $region3: #{lrn_forward.1} parent=0 // pred_check_branch
    %7 = sbr.rel (0) target = $region5
  $region4: #{lrn_forward.1} parent=0 // pred_region
    _
  $region5: #{lrn_forward.1} parent=0 // pred_fallthru
    _
  %v8 = vld [vmem:[%s0] sm:$0xff]
  %v9 = vld [vmem:[%s0 + $0x8] sm:$0xff]
  %v10 = vld [vmem:[%s0 + $0x10] sm:$0xff]
  %v11 = vld [vmem:[%s0 + $0x18] sm:$0xff]
  %v12 = vmul.f32 %v8, %v8
  %v13 = vmul.f32 %v9, %v9
  %v14 = vmul.f32 %v10, %v10
  %v15 = vmul.f32 %v11, %v11
  %v16 = vadd.f32 %v12, 1.0
  %v17 = vadd.f32 %v13, 1.0
  %v18 = vadd.f32 %v14, 1.0
  %v19 = vadd.f32 %v15, 1.0
  %v20 = vrsqrt.pop %v16
  %v21 = vrsqrt.pop %v17
  %v22 = vrsqrt.pop %v18
  %v23 = vrsqrt.pop %v19
  %v24 = vrsqrt.pop %v20
  %v25 = vmul.f32 %v20, %v24
  %vm26 = vcmp.eq.f32.partialorder %v20, inf
  %v27 = vsel %vm26, %v20, %v25
  %vm28 = vcmp.eq.f32.partialorder %v20, 0.0
  %v29 = vand.u32 %v20, 2147483648
  %v30 = vsel %vm28, %v29, %v27
  %v31 = vrsqrt.pop %v21
  %v32 = vmul.f32 %v21, %v31
  %vm33 = vcmp.eq.f32.partialorder %v21, inf
  %v34 = vsel %vm33, %v21, %v32
  %vm35 = vcmp.eq.f32.partialorder %v21, 0.0
  %v36 = vand.u32 %v21, 2147483648
  %v37 = vsel %vm35, %v36, %v34
  %v38 = vrsqrt.pop %v22
  %v39 = vmul.f32 %v22, %v38
  %vm40 = vcmp.eq.f32.partialorder %v22, inf
  %v41 = vsel %vm40, %v22, %v39
  %vm42 = vcmp.eq.f32.partialorder %v22, 0.0
  %v43 = vand.u32 %v22, 2147483648
  %v44 = vsel %vm42, %v43, %v41
  %v45 = vrsqrt.pop %v23
  %v46 = vmul.f32 %v23, %v45
  %vm47 = vcmp.eq.f32.partialorder %v23, inf
  %v48 = vsel %vm47, %v23, %v46
  %vm49 = vcmp.eq.f32.partialorder %v23, 0.0
  %v50 = vand.u32 %v23, 2147483648
  %v51 = vsel %vm49, %v50, %v48
  %v52 = vmul.f32 %v20, %v30
  %v53 = vmul.f32 %v21, %v37
  %v54 = vmul.f32 %v22, %v44
  %v55 = vmul.f32 %v23, %v51
  %v56 = vmul.f32 %v8, %v52
  %v57 = vmul.f32 %v9, %v53
  %v58 = vmul.f32 %v10, %v54
  %v59 = vmul.f32 %v11, %v55
  %60 = vst [vmem:[%s1] sm:$0xff] %v56
  %61 = vst [vmem:[%s1 + $0x8] sm:$0xff] %v57
  %62 = vst [vmem:[%s1 + $0x10] sm:$0xff] %v58
  %63 = vst [vmem:[%s1 + $0x18] sm:$0xff] %v59
  // Predicated region
  $region6: #{lrn_forward.1} parent=0 // pred_check
    _
  $region7: #{lrn_forward.1} parent=0 // pred_check_branch
    %65 = sbr.rel (0) target = $region9
  $region8: #{lrn_forward.1} parent=0 // pred_region
    _
  $region9: #{lrn_forward.1} parent=0 // pred_fallthru
    _
  // Predicated region
  $region10: #{lrn_forward.1} parent=0 // pred_check
    _
  $region11: #{lrn_forward.1} parent=0 // pred_check_branch
    %67 = sbr.rel (0) target = $region13
  $region12: #{lrn_forward.1} parent=0 // pred_region
    _
  $region13: #{lrn_forward.1} parent=0 // pred_fallthru
    _

</llo_original>
